<compile_context>
chip_gen: v5e
topology: v5e:2x2
jax: 0.10.0
libtpu: 0.0.40
codegen_flags: <defaults>
</compile_context>

<pallas_src>
import functools

import jax
import jax.numpy as jnp
import numpy as np
from jax.experimental import pallas as pl
from jax.experimental.pallas import tpu as pltpu


def _vq_kernel(z_ref, w_ref, wt_ref, wsq_ref,
               zq_ref, idx_ref, err_ref, cnt_ref,
               *, hw_valid, tile):
    """One (batch, hw-tile) step.

    Ref shapes:
      z_ref   : (1, D, T)   input activations (channel-major)
      w_ref   : (K, D)      codebook
      wt_ref  : (D, K)      codebook, pre-transposed in the wrapper
      wsq_ref : (K, 1)      ||w_k||^2, precomputed in the wrapper
      zq_ref  : (1, D, T)   quantized output (channel-major)
      idx_ref : (1, 1, T)   argmin code index per token
      err_ref : (1, 1, T)   per-token ||z_q - z_n||^2 (masked for padding)
      cnt_ref : (1, 1, K, 8) per-tile code-usage counts (column-replicated)
    """
    z = z_ref[0].astype(jnp.float32)          # (D, T)
    w = w_ref[...].astype(jnp.float32)        # (K, D)
    wt = wt_ref[...].astype(jnp.float32)      # (D, K)
    wsq = wsq_ref[...]                        # (K, 1)

    _, t = z.shape
    k = w.shape[0]

    # l2norm over the embedding (sublane) axis, matching F.normalize:
    #   x / max(||x||, 1e-12)
    ssq = jnp.sum(z * z, axis=0, keepdims=True)            # (1, T)
    denom = jnp.maximum(jnp.sqrt(ssq), 1e-12)
    z_n = z / denom                                        # (D, T)
    z_sq = ssq / (denom * denom)                           # (1, T) == sum(z_n^2)

    # distances without the per-token constant (argmin-invariant):
    #   d[k, t] = ||w_k||^2 - 2 <w_k, z_t>
    zw = jnp.dot(w, z_n, preferred_element_type=jnp.float32)   # (K, T)  MXU
    dist = wsq - 2.0 * zw                                      # (K, T)

    # argmin over the codebook (sublane) axis, first occurrence like torch.argmin
    d_min = jnp.min(dist, axis=0, keepdims=True)                          # (1, T)
    row = jax.lax.broadcasted_iota(jnp.int32, (k, t), 0)                  # (K, T)
    idx = jnp.min(jnp.where(dist == d_min, row, k), axis=0, keepdims=True)
    idx = idx.astype(jnp.int32)                                           # (1, T)

    onehot = (row == idx).astype(jnp.float32)                             # (K, T)
    # per-token squared error of the chosen code: ||z_q - z_n||^2 = z_sq + d_min
    err = z_sq + d_min                                                    # (1, T)

    if hw_valid % tile != 0:
        # static branch: mask out zero-padded token columns in the last tile
        col = (pl.program_id(1) * tile
               + jax.lax.broadcasted_iota(jnp.int32, (1, t), 1))
        valid = (col < hw_valid).astype(jnp.float32)                      # (1, T)
        onehot = onehot * valid
        err = err * valid

    # codebook gather as a one-hot matmul, produced channel-major so the store
    # is lane dense: z_q^T = W^T @ onehot   -> (D, T)
    zq = jnp.dot(wt, onehot, preferred_element_type=jnp.float32)
    zq_ref[0] = zq.astype(zq_ref.dtype)

    idx_ref[0] = idx
    err_ref[0] = err

    # per-tile code usage counts on the MXU (frees XLU/VPU reduce slots);
    # all 8 result columns are identical, the wrapper reads column 0.
    cnt_ref[0, 0] = jnp.dot(onehot, jnp.ones((t, 8), jnp.float32),
                            preferred_element_type=jnp.float32)           # (K, 8)


def _pick_tile(hw, tile_hint):
    """Largest power-of-two tile <= tile_hint that divides H*W, else 128 (+pad)."""
    hint = max(int(tile_hint), 128)
    for t in (1024, 512, 256, 128):
        if t <= hint and hw % t == 0:
            return t, False
    return 128, True


def norm_ema_vq_forward(z_nchw, weight, cluster_size, *, beta, decay, tile_n=512):
    """Pallas implementation of NormEMAVectorQuantizer.forward (eval mode).

    Returns (z_q [B,C,H,W], loss scalar, encoding_indices [B*H*W],
             updated cluster_size [K]).
    """
    B, C, H, W = z_nchw.shape
    K, D = weight.shape
    assert D == C, "embedding_dim must equal channel dim"
    HW = H * W

    tile, needs_pad = _pick_tile(HW, tile_n)
    hw_pad = pl.cdiv(HW, tile) * tile
    n_tiles = hw_pad // tile

    # NCHW viewed channel-major: (B, C, H*W); no transpose pass through HBM.
    z3 = z_nchw.reshape(B, C, HW)
    if needs_pad and hw_pad != HW:
        z3 = jnp.pad(z3, ((0, 0), (0, 0), (0, hw_pad - HW)))

    # hoisted codebook quantities (computed once, VMEM-resident in the kernel)
    w_f32 = weight.astype(jnp.float32)                       # (K, D)
    w_t = jnp.transpose(w_f32)                               # (D, K)
    w_sq = jnp.sum(w_f32 * w_f32, axis=1, keepdims=True)     # (K, 1)

    kernel = functools.partial(_vq_kernel, hw_valid=HW, tile=tile)

    zq3, idx3, err3, cnts = pl.pallas_call(
        kernel,
        grid=(B, n_tiles),
        in_specs=[
            pl.BlockSpec((1, C, tile), lambda b, i: (b, 0, i)),   # z (streamed)
            pl.BlockSpec((K, D), lambda b, i: (0, 0)),            # W (resident)
            pl.BlockSpec((D, K), lambda b, i: (0, 0)),            # W^T (resident)
            pl.BlockSpec((K, 1), lambda b, i: (0, 0)),            # ||w||^2 (resident)
        ],
        out_specs=(
            pl.BlockSpec((1, C, tile), lambda b, i: (b, 0, i)),   # z_q (lane dense)
            pl.BlockSpec((1, 1, tile), lambda b, i: (b, 0, i)),   # indices (lane dense)
            pl.BlockSpec((1, 1, tile), lambda b, i: (b, 0, i)),   # per-token sq error
            pl.BlockSpec((1, 1, K, 8), lambda b, i: (b, i, 0, 0)),  # per-tile counts
        ),
        out_shape=(
            jax.ShapeDtypeStruct((B, C, hw_pad), z_nchw.dtype),
            jax.ShapeDtypeStruct((B, 1, hw_pad), jnp.int32),
            jax.ShapeDtypeStruct((B, 1, hw_pad), jnp.float32),
            jax.ShapeDtypeStruct((B, n_tiles, K, 8), jnp.float32),
        ),
        compiler_params=pltpu.CompilerParams(
            dimension_semantics=("parallel", "parallel"),
            vmem_limit_bytes=32 * 1024 * 1024,
        ),
    )(z3, w_f32, w_t, w_sq)

    # straight-through output equals z_q in value; back to NCHW (pure reshape)
    z_q = zq3[:, :, :HW].reshape(B, C, H, W)
    indices = idx3[:, 0, :HW].reshape(-1)

    # loss = beta * mean((z_q - z_n)^2) over ALL B*H*W*D elements (global N)
    loss = beta * jnp.sum(err3[:, 0, :HW]) / float(B * HW * D)

    # eval-mode EMA update of cluster_size (the module updates it under no_grad)
    counts = jnp.sum(cnts[..., 0], axis=(0, 1))               # (K,)
    new_cluster_size = decay * cluster_size + (1.0 - decay) * counts
    return z_q, loss, indices, new_cluster_size


if __name__ == "__main__":
    # module hyper-params: n_embed=128, embedding_dim=32, beta=0.25, decay=0.99
    B, C, H, W = 2, 32, 16, 16        # N = B*H*W = 512 tokens, D = 32
    n_embed = 128
    beta, decay = 0.25, 0.99

    key = jax.random.PRNGKey(0)
    k_z, k_w = jax.random.split(key)
    z = jax.random.normal(k_z, (B, C, H, W), jnp.float32)

    # EmbeddingEMA init (kmeans_init=False path): weight = l2norm(randn(K, D))
    w = jax.random.normal(k_w, (n_embed, C), jnp.float32)
    w = w / jnp.maximum(jnp.sqrt(jnp.sum(w * w, axis=-1, keepdims=True)), 1e-12)
    cs0 = jnp.zeros((n_embed,), jnp.float32)

    # tile_n=128 -> grid (B=2, n_tiles=2): exercises the multi-tile parallel grid
    z_q, loss, indices, new_cs = norm_ema_vq_forward(
        z, w, cs0, beta=beta, decay=decay, tile_n=128)
    jax.block_until_ready((z_q, loss, indices, new_cs))

    # ---------- plain-JAX / numpy reference (eval mode) ----------
    z_nhwc = jnp.transpose(z, (0, 2, 3, 1))
    nrm = jnp.sqrt(jnp.sum(z_nhwc * z_nhwc, axis=-1, keepdims=True))
    z_n_ref = (z_nhwc / jnp.maximum(nrm, 1e-12)).reshape(-1, C)
    d_ref = (jnp.sum(z_n_ref ** 2, axis=1, keepdims=True)
             + jnp.sum(w ** 2, axis=1)[None, :]
             - 2.0 * jnp.dot(z_n_ref, w.T, precision=jax.lax.Precision.HIGHEST))
    r_idx = np.asarray(jnp.argmin(d_ref, axis=1))

    d_ref = np.asarray(d_ref)
    z_n_ref = np.asarray(z_n_ref)
    w_np = np.asarray(w)
    idx_np = np.asarray(indices)
    n_tok = idx_np.shape[0]

    # 1) kernel indices must pick (numerically) optimal codes; exact agreement
    #    with the reference argmin is also checked, tolerating fp near-ties.
    d_chosen = d_ref[np.arange(n_tok), idx_np]
    assert np.all(d_chosen <= d_ref.min(axis=1) + 1e-5), "non-optimal code index"
    assert np.mean(idx_np == r_idx) > 0.99, "argmin mismatch"

    # 2) z_q must be the gathered codebook rows (checked in NCHW layout)
    zq_tokens = np.asarray(jnp.transpose(z_q, (0, 2, 3, 1))).reshape(-1, C)
    assert np.allclose(zq_tokens, w_np[idx_np], atol=1e-4, rtol=1e-4), "z_q mismatch"

    # 3) commitment loss beta * mse(z_q, z_normalized)
    r_loss = beta * np.mean((w_np[idx_np] - z_n_ref) ** 2)
    assert abs(float(loss) - float(r_loss)) < 1e-5, (float(loss), float(r_loss))

    # 4) eval-mode EMA cluster_size update
    r_counts = np.bincount(idx_np, minlength=n_embed).astype(np.float32)
    r_cs = decay * np.asarray(cs0) + (1.0 - decay) * r_counts
    assert np.allclose(np.asarray(new_cs), r_cs, atol=1e-5), "cluster_size mismatch"

    print("KERNEL_OK")
</pallas_src>

<mosaic_0001>
module attributes {stable_mosaic.version = 11 : i64} {
  func.func @_vq_kernel(%arg0: i32, %arg1: i32, %arg2: memref<1x32x128xf32, #tpu.memory_space<vmem>>, %arg3: memref<128x32xf32, #tpu.memory_space<vmem>>, %arg4: memref<32x128xf32, #tpu.memory_space<vmem>>, %arg5: memref<128x1xf32, #tpu.memory_space<vmem>>, %arg6: memref<1x32x128xf32, #tpu.memory_space<vmem>>, %arg7: memref<1x1x128xi32, #tpu.memory_space<vmem>>, %arg8: memref<1x1x128xf32, #tpu.memory_space<vmem>>, %arg9: memref<1x1x128x8xf32, #tpu.memory_space<vmem>>) attributes {dimension_semantics = [#tpu.dimension_semantics<parallel>, #tpu.dimension_semantics<parallel>], iteration_bounds = array<i64: 2, 2>, scalar_prefetch = 0 : i64, scratch_operands = 0 : i64, tpu.core_type = #tpu.core_type<tc>, window_params = [{transform_indices = @transform_0, window_bounds = array<i64: 1, 32, 128>}, {pipeline_mode = #tpu.pipeline_mode<synchronous>, transform_indices = @transform_1, window_bounds = array<i64: 128, 32>}, {pipeline_mode = #tpu.pipeline_mode<synchronous>, transform_indices = @transform_2, window_bounds = array<i64: 32, 128>}, {pipeline_mode = #tpu.pipeline_mode<synchronous>, transform_indices = @transform_3, window_bounds = array<i64: 128, 1>}, {transform_indices = @transform_4, window_bounds = array<i64: 1, 32, 128>}, {transform_indices = @transform_5, window_bounds = array<i64: 1, 1, 128>}, {transform_indices = @transform_6, window_bounds = array<i64: 1, 1, 128>}, {transform_indices = @transform_7, window_bounds = array<i64: 1, 1, 128, 8>}]} {
    %c0 = arith.constant 0 : index
    %c0_0 = arith.constant 0 : index
    %c0_1 = arith.constant 0 : index
    %0 = vector.load %arg2[%c0, %c0_0, %c0_1] : memref<1x32x128xf32, #tpu.memory_space<vmem>>, vector<1x32x128xf32>
    %1 = vector.shape_cast %0 : vector<1x32x128xf32> to vector<32x128xf32>
    %c0_2 = arith.constant 0 : index
    %c0_3 = arith.constant 0 : index
    %2 = vector.load %arg3[%c0_2, %c0_3] : memref<128x32xf32, #tpu.memory_space<vmem>>, vector<128x32xf32>
    %c0_4 = arith.constant 0 : index
    %c0_5 = arith.constant 0 : index
    %3 = vector.load %arg4[%c0_4, %c0_5] : memref<32x128xf32, #tpu.memory_space<vmem>>, vector<32x128xf32>
    %c0_6 = arith.constant 0 : index
    %c0_7 = arith.constant 0 : index
    %4 = vector.load %arg5[%c0_6, %c0_7] : memref<128x1xf32, #tpu.memory_space<vmem>>, vector<128x1xf32>
    %5 = arith.mulf %1, %1 : vector<32x128xf32>
    %cst = arith.constant dense<0.000000e+00> : vector<128xf32>
    %6 = vector.multi_reduction <add>, %5, %cst [0] : vector<32x128xf32> to vector<128xf32>
    %7 = vector.shape_cast %6 : vector<128xf32> to vector<1x128xf32>
    %8 = math.sqrt %7 : vector<1x128xf32>
    %cst_8 = arith.constant 9.99999996E-13 : f32
    %9 = vector.broadcast %cst_8 : f32 to vector<1x128xf32>
    %10 = arith.maximumf %8, %9 : vector<1x128xf32>
    %11 = vector.broadcast %10 : vector<1x128xf32> to vector<32x128xf32>
    %12 = arith.divf %1, %11 : vector<32x128xf32>
    %13 = arith.mulf %10, %10 : vector<1x128xf32>
    %14 = arith.divf %7, %13 : vector<1x128xf32>
    %cst_9 = arith.constant dense<0.000000e+00> : vector<128x128xf32>
    %15 = tpu.matmul %2, %12, %cst_9 {dimension_numbers = #tpu.dot_dimension_numbers<[1], [0], [0], [1], [0, 0, 1, 1], [], []>} : vector<128x32xf32>, vector<32x128xf32>, vector<128x128xf32> -> vector<128x128xf32>
    %cst_10 = arith.constant 2.000000e+00 : f32
    %16 = vector.broadcast %cst_10 : f32 to vector<128x128xf32>
    %17 = arith.mulf %16, %15 : vector<128x128xf32>
    %18 = vector.broadcast %4 : vector<128x1xf32> to vector<128x128xf32>
    %19 = arith.subf %18, %17 : vector<128x128xf32>
    %cst_11 = arith.constant dense<0x7F800000> : vector<128xf32>
    %20 = vector.multi_reduction <minimumf>, %19, %cst_11 [0] : vector<128x128xf32> to vector<128xf32>
    %21 = vector.shape_cast %20 : vector<128xf32> to vector<1x128xf32>
    %22 = tpu.iota {dimensions = array<i32: 0>} : vector<128x128xi32>
    %23 = vector.broadcast %21 : vector<1x128xf32> to vector<128x128xf32>
    %24 = arith.cmpf oeq, %19, %23 : vector<128x128xf32>
    %c128_i32 = arith.constant 128 : i32
    %25 = vector.broadcast %c128_i32 : i32 to vector<128x128xi32>
    %26 = arith.select %24, %22, %25 : vector<128x128xi1>, vector<128x128xi32>
    %cst_12 = arith.constant dense<2147483647> : vector<128xi32>
    %27 = vector.multi_reduction <minsi>, %26, %cst_12 [0] : vector<128x128xi32> to vector<128xi32>
    %28 = vector.shape_cast %27 : vector<128xi32> to vector<1x128xi32>
    %29 = vector.broadcast %28 : vector<1x128xi32> to vector<128x128xi32>
    %30 = arith.cmpi eq, %22, %29 : vector<128x128xi32>
    %31 = arith.extui %30 : vector<128x128xi1> to vector<128x128xi32>
    %32 = arith.sitofp %31 : vector<128x128xi32> to vector<128x128xf32>
    %33 = arith.addf %14, %21 : vector<1x128xf32>
    %cst_13 = arith.constant dense<0.000000e+00> : vector<32x128xf32>
    %34 = tpu.matmul %3, %32, %cst_13 {dimension_numbers = #tpu.dot_dimension_numbers<[1], [0], [0], [1], [0, 0, 1, 1], [], []>} : vector<32x128xf32>, vector<128x128xf32>, vector<32x128xf32> -> vector<32x128xf32>
    %c0_14 = arith.constant 0 : index
    %c0_15 = arith.constant 0 : index
    %c0_16 = arith.constant 0 : index
    %35 = vector.load %arg6[%c0_14, %c0_15, %c0_16] : memref<1x32x128xf32, #tpu.memory_space<vmem>>, vector<1x32x128xf32>
    %36 = vector.shape_cast %35 : vector<1x32x128xf32> to vector<32x128xf32>
    %37 = vector.shape_cast %34 : vector<32x128xf32> to vector<1x32x128xf32>
    tpu.vector_store %arg6[%c0_14, %c0_15, %c0_16], %37 {strides = array<i32>} : memref<1x32x128xf32, #tpu.memory_space<vmem>>, vector<1x32x128xf32>,
    %c0_17 = arith.constant 0 : index
    %c0_18 = arith.constant 0 : index
    %c0_19 = arith.constant 0 : index
    %38 = vector.load %arg7[%c0_17, %c0_18, %c0_19] : memref<1x1x128xi32, #tpu.memory_space<vmem>>, vector<1x1x128xi32>
    %39 = vector.shape_cast %38 : vector<1x1x128xi32> to vector<1x128xi32>
    %40 = vector.shape_cast %28 : vector<1x128xi32> to vector<1x1x128xi32>
    tpu.vector_store %arg7[%c0_17, %c0_18, %c0_19], %40 {strides = array<i32>} : memref<1x1x128xi32, #tpu.memory_space<vmem>>, vector<1x1x128xi32>,
    %c0_20 = arith.constant 0 : index
    %c0_21 = arith.constant 0 : index
    %c0_22 = arith.constant 0 : index
    %41 = vector.load %arg8[%c0_20, %c0_21, %c0_22] : memref<1x1x128xf32, #tpu.memory_space<vmem>>, vector<1x1x128xf32>
    %42 = vector.shape_cast %41 : vector<1x1x128xf32> to vector<1x128xf32>
    %43 = vector.shape_cast %33 : vector<1x128xf32> to vector<1x1x128xf32>
    tpu.vector_store %arg8[%c0_20, %c0_21, %c0_22], %43 {strides = array<i32>} : memref<1x1x128xf32, #tpu.memory_space<vmem>>, vector<1x1x128xf32>,
    %cst_23 = arith.constant 1.000000e+00 : f32
    %44 = vector.broadcast %cst_23 : f32 to vector<128x8xf32>
    %cst_24 = arith.constant dense<0.000000e+00> : vector<128x8xf32>
    %45 = tpu.matmul %32, %44, %cst_24 {dimension_numbers = #tpu.dot_dimension_numbers<[1], [0], [0], [1], [0, 0, 1, 1], [], []>} : vector<128x128xf32>, vector<128x8xf32>, vector<128x8xf32> -> vector<128x8xf32>
    %c0_25 = arith.constant 0 : index
    %c0_26 = arith.constant 0 : index
    %c0_27 = arith.constant 0 : index
    %c0_28 = arith.constant 0 : index
    %46 = vector.load %arg9[%c0_25, %c0_26, %c0_27, %c0_28] : memref<1x1x128x8xf32, #tpu.memory_space<vmem>>, vector<1x1x128x8xf32>
    %47 = vector.shape_cast %46 : vector<1x1x128x8xf32> to vector<128x8xf32>
    %48 = vector.shape_cast %45 : vector<128x8xf32> to vector<1x1x128x8xf32>
    tpu.vector_store %arg9[%c0_25, %c0_26, %c0_27, %c0_28], %48 {strides = array<i32>} : memref<1x1x128x8xf32, #tpu.memory_space<vmem>>, vector<1x1x128x8xf32>,
    return
  }
  func.func @transform_0(%arg0: i32, %arg1: i32) -> (i32, i32, i32) {
    %c0_i32 = arith.constant 0 : i32
    %c0_i32_0 = arith.constant 0 : i32
    return %arg0, %c0_i32, %arg1 : i32, i32, i32
  }
  func.func @transform_1(%arg0: i32, %arg1: i32) -> (i32, i32) {
    %c0_i32 = arith.constant 0 : i32
    %c0_i32_0 = arith.constant 0 : i32
    %c0_i32_1 = arith.constant 0 : i32
    return %c0_i32, %c0_i32_0 : i32, i32
  }
  func.func @transform_2(%arg0: i32, %arg1: i32) -> (i32, i32) {
    %c0_i32 = arith.constant 0 : i32
    %c0_i32_0 = arith.constant 0 : i32
    %c0_i32_1 = arith.constant 0 : i32
    return %c0_i32, %c0_i32_0 : i32, i32
  }
  func.func @transform_3(%arg0: i32, %arg1: i32) -> (i32, i32) {
    %c0_i32 = arith.constant 0 : i32
    %c0_i32_0 = arith.constant 0 : i32
    %c0_i32_1 = arith.constant 0 : i32
    return %c0_i32, %c0_i32_0 : i32, i32
  }
  func.func @transform_4(%arg0: i32, %arg1: i32) -> (i32, i32, i32) {
    %c0_i32 = arith.constant 0 : i32
    %c0_i32_0 = arith.constant 0 : i32
    return %arg0, %c0_i32, %arg1 : i32, i32, i32
  }
  func.func @transform_5(%arg0: i32, %arg1: i32) -> (i32, i32, i32) {
    %c0_i32 = arith.constant 0 : i32
    %c0_i32_0 = arith.constant 0 : i32
    return %arg0, %c0_i32, %arg1 : i32, i32, i32
  }
  func.func @transform_6(%arg0: i32, %arg1: i32) -> (i32, i32, i32) {
    %c0_i32 = arith.constant 0 : i32
    %c0_i32_0 = arith.constant 0 : i32
    return %arg0, %c0_i32, %arg1 : i32, i32, i32
  }
  func.func @transform_7(%arg0: i32, %arg1: i32) -> (i32, i32, i32, i32) {
    %c0_i32 = arith.constant 0 : i32
    %c0_i32_0 = arith.constant 0 : i32
    %c0_i32_1 = arith.constant 0 : i32
    return %arg0, %arg1, %c0_i32, %c0_i32_0 : i32, i32, i32, i32
  }
}

</mosaic_0001>

<llo_original>
// kernel: tpu_custom_call.1
$region0: #{tpu_custom_call.1}
  #allocation0 [shape = 'u32[]', space=smem, size = 0x4, offset = 0x4, fixed_abs, tag = 'smem constant byte address 0x4 - core index']
  #allocation1 [shape = 'u32[72,128]{1,0:T(1,128)}', space=vmem, size = 0x9000, scoped, tag = 'internal scratch']
  %s0 = inlined_call_operand.vmem [shape: f32[2,32,256], index: 0, kind: input, shape index: {}]
  %s1 = inlined_call_operand.vmem [shape: f32[128,32], index: 1, kind: input, shape index: {}]
  %s2 = inlined_call_operand.vmem [shape: f32[32,128], index: 2, kind: input, shape index: {}]
  %s3 = inlined_call_operand.vmem [shape: f32[128,1], index: 3, kind: input, shape index: {}]
  %s4 = inlined_call_operand.hbm [shape: f32[2,32,256], index: 4, kind: output, shape index: {0}]
  %s5 = inlined_call_operand.hbm [shape: s32[2,1,256], index: 5, kind: output, shape index: {1}]
  %s6 = inlined_call_operand.hbm [shape: f32[2,1,256], index: 6, kind: output, shape index: {2}]
  %s7 = inlined_call_operand.vmem [shape: f32[2,2,128,8], index: 7, kind: output, shape index: {3}]
  %8 = xla_tuple %s4, %s5, %s6, %s7
  %s9 = sld [smem:[#allocation0]]
  $region111: #{tpu_custom_call.1} parent=0
    _
  %s11 = ssub.s32 1, %s9
  %s12 = scalar_select 0, %s11, %s9
  $region1: #{tpu_custom_call.1} parent=0
    #allocation2 [shape = 'u8[32768]{0}', space=vmem, size = 0x8000, scoped, tag = 'input window, operand 0']
    #allocation3 [shape = 'u8[32768]{0}', space=vmem, size = 0x8000, scoped, tag = 'output window, operand 0']
    #allocation4 [shape = 's32[2]{0}', space=sflag, size = 0x8, scoped, tag = 'scoped memory for tpu_custom_call.1']
    #allocation5 [shape = 'u8[1024]{0}', space=vmem, size = 0x400, scoped, tag = 'output window, operand 1']
    #allocation6 [shape = 's32[2]{0}', space=sflag, size = 0x8, scoped, tag = 'scoped memory for tpu_custom_call.1']
    #allocation7 [shape = 'u8[1024]{0}', space=vmem, size = 0x400, scoped, tag = 'output window, operand 2']
    %13 = vsyncpa [#allocation4], 0
    %s14 = scalar_lea.sflag [#allocation4], 1
    %15 = vsyncpa %s14, 0
    %16 = vsyncpa [#allocation6], 0
    %s17 = scalar_lea.sflag [#allocation6], 1
    %18 = vsyncpa %s17, 0
    loop: start=0, step=1, limit=6
    $region2: #{tpu_custom_call.1} parent=1 // loop_pre_header
      _
    $region3: #{tpu_custom_call.1} parent=1 // loop_header
      %s20 = sphi 0, %s24
      %p21 = scmp.ge.s32.totalorder %s20, 6
      %s27 = sphi 0, %s39
      %s28 = sphi 0, %s35
      %s29 = sphi 0, %s27
      %s30 = sphi 0, %s28
      %s31 = sphi 0, %s29
      %s32 = sphi 0, %s30
      %s44 = sphi 0, %s46
      %s47 = sphi 0, %s44
      %s48 = sphi 0, %s47
      %s64 = sphi 0, %s48
      %s68 = sphi 0, %s68
      %s70 = sphi 0, %s68
      %s71 = sphi 0, %s70
      %s85 = sphi 0, %s71
      %s89 = sphi 0, %s89
      %s91 = sphi 0, %s89
      %s92 = sphi 0, %s91
      %s106 = sphi 0, %s92
      %s110 = sphi 0, %s110
      %s112 = sphi 0, %s110
      %s113 = sphi 0, %s112
      %s127 = sphi 0, %s113
      %s135 = sphi 0, %s137
      %s138 = sphi 0, %s135
      %s139 = sphi 0, %s138
      %s155 = sphi 0, %s139
      %s163 = sphi 0, %s165
      %s166 = sphi 0, %s163
      %s167 = sphi 0, %s166
      %s183 = sphi 0, %s167
      %s191 = sphi 0, %s193
      %s194 = sphi 0, %s191
      %s195 = sphi 0, %s194
      %s211 = sphi 0, %s195
      %s219 = sphi 0, %s221
      %s222 = sphi 0, %s219
      %s223 = sphi 0, %s222
      %s239 = sphi 0, %s223
    $region4: #{tpu_custom_call.1} parent=1 // loop_header_branch
      %23 = sbr.rel (%p21) target = $region8
    $region5: #{tpu_custom_call.1} parent=1 // loop_body
      %s25 = ssub.s32 %s20, 1
      %s26 = ssub.s32 %s20, 2
      %s33 = sadd.s32 1, %s28
      %p34 = scmp.ge.s32.totalorder %s33, 2
      %s35 = scalar_select %p34, 0, %s33
      %s36 = sadd.s32 1, %s27
      %s37 = scalar_select %p34, %s36, %s27
      %p38 = scmp.ge.s32.totalorder %s37, 2
      %s39 = scalar_select %p38, 0, %s37
      %s40 = ssub.s32 %s27, %s39
      %s41 = ssub.s32 %s28, %s35
      %s42 = sor.u32 %s40, %s41
      %p43 = scmp.eq.s32.totalorder %s42, 0
      %s45 = sadd.s32 %s44, 1
      %s46 = scalar_select %p43, %s44, %s45
      %p49 = pneg %p43
      %p50 = scmp.eq.s32.totalorder %s20, 3
      %p51 = por %p49, %p50
      %p52 = scmp.ne.s32.totalorder %s44, %s47
      %p53 = scmp.eq.s32.totalorder %s20, 0
      %p54 = por %p52, %p53
      %p55 = scmp.ne.s32.totalorder %s44, %s47
      %p56 = scmp.eq.s32.totalorder %s25, 3
      %p57 = por %p55, %p56
      %p58 = scmp.ne.s32.totalorder %s47, %s48
      %p59 = scmp.eq.s32.totalorder %s25, 0
      %p60 = por %p58, %p59
      %p61 = scmp.ne.s32.totalorder %s47, %s48
      %p62 = scmp.eq.s32.totalorder %s26, 3
      %p63 = por %p61, %p62
      %p65 = scmp.ne.s32.totalorder %s48, %s64
      %p66 = scmp.eq.s32.totalorder %s26, 0
      %p67 = por %p65, %p66
      %s69 = sadd.s32 %s68, 1
      %p72 = scmp.eq.s32.totalorder %s20, 3
      %p73 = scmp.ne.s32.totalorder %s68, %s70
      %p74 = scmp.eq.s32.totalorder %s20, 0
      %p75 = por %p73, %p74
      %p76 = scmp.ne.s32.totalorder %s68, %s70
      %p77 = scmp.eq.s32.totalorder %s25, 3
      %p78 = por %p76, %p77
      %p79 = scmp.ne.s32.totalorder %s70, %s71
      %p80 = scmp.eq.s32.totalorder %s25, 0
      %p81 = por %p79, %p80
      %p82 = scmp.ne.s32.totalorder %s70, %s71
      %p83 = scmp.eq.s32.totalorder %s26, 3
      %p84 = por %p82, %p83
      %p86 = scmp.ne.s32.totalorder %s71, %s85
      %p87 = scmp.eq.s32.totalorder %s26, 0
      %p88 = por %p86, %p87
      %s90 = sadd.s32 %s89, 1
      %p93 = scmp.eq.s32.totalorder %s20, 3
      %p94 = scmp.ne.s32.totalorder %s89, %s91
      %p95 = scmp.eq.s32.totalorder %s20, 0
      %p96 = por %p94, %p95
      %p97 = scmp.ne.s32.totalorder %s89, %s91
      %p98 = scmp.eq.s32.totalorder %s25, 3
      %p99 = por %p97, %p98
      %p100 = scmp.ne.s32.totalorder %s91, %s92
      %p101 = scmp.eq.s32.totalorder %s25, 0
      %p102 = por %p100, %p101
      %p103 = scmp.ne.s32.totalorder %s91, %s92
      %p104 = scmp.eq.s32.totalorder %s26, 3
      %p105 = por %p103, %p104
      %p107 = scmp.ne.s32.totalorder %s92, %s106
      %p108 = scmp.eq.s32.totalorder %s26, 0
      %p109 = por %p107, %p108
      %s111 = sadd.s32 %s110, 1
      %p114 = scmp.eq.s32.totalorder %s20, 3
      %p115 = scmp.ne.s32.totalorder %s110, %s112
      %p116 = scmp.eq.s32.totalorder %s20, 0
      %p117 = por %p115, %p116
      %p118 = scmp.ne.s32.totalorder %s110, %s112
      %p119 = scmp.eq.s32.totalorder %s25, 3
      %p120 = por %p118, %p119
      %p121 = scmp.ne.s32.totalorder %s112, %s113
      %p122 = scmp.eq.s32.totalorder %s25, 0
      %p123 = por %p121, %p122
      %p124 = scmp.ne.s32.totalorder %s112, %s113
      %p125 = scmp.eq.s32.totalorder %s26, 3
      %p126 = por %p124, %p125
      %p128 = scmp.ne.s32.totalorder %s113, %s127
      %p129 = scmp.eq.s32.totalorder %s26, 0
      %p130 = por %p128, %p129
      %s131 = ssub.s32 %s27, %s39
      %s132 = ssub.s32 %s28, %s35
      %s133 = sor.u32 %s131, %s132
      %p134 = scmp.eq.s32.totalorder %s133, 0
      %s136 = sadd.s32 %s135, 1
      %s137 = scalar_select %p134, %s135, %s136
      %p140 = pneg %p134
      %p141 = scmp.eq.s32.totalorder %s20, 3
      %p142 = por %p140, %p141
      %p143 = scmp.ne.s32.totalorder %s135, %s138
      %p144 = scmp.eq.s32.totalorder %s20, 0
      %p145 = por %p143, %p144
      %p146 = scmp.ne.s32.totalorder %s135, %s138
      %p147 = scmp.eq.s32.totalorder %s25, 3
      %p148 = por %p146, %p147
      %p149 = scmp.ne.s32.totalorder %s138, %s139
      %p150 = scmp.eq.s32.totalorder %s25, 0
      %p151 = por %p149, %p150
      %p152 = scmp.ne.s32.totalorder %s138, %s139
      %p153 = scmp.eq.s32.totalorder %s26, 3
      %p154 = por %p152, %p153
      %p156 = scmp.ne.s32.totalorder %s139, %s155
      %p157 = scmp.eq.s32.totalorder %s26, 0
      %p158 = por %p156, %p157
      %s159 = ssub.s32 %s27, %s39
      %s160 = ssub.s32 %s28, %s35
      %s161 = sor.u32 %s159, %s160
      %p162 = scmp.eq.s32.totalorder %s161, 0
      %s164 = sadd.s32 %s163, 1
      %s165 = scalar_select %p162, %s163, %s164
      %p168 = pneg %p162
      %p169 = scmp.eq.s32.totalorder %s20, 3
      %p170 = por %p168, %p169
      %p171 = scmp.ne.s32.totalorder %s163, %s166
      %p172 = scmp.eq.s32.totalorder %s20, 0
      %p173 = por %p171, %p172
      %p174 = scmp.ne.s32.totalorder %s163, %s166
      %p175 = scmp.eq.s32.totalorder %s25, 3
      %p176 = por %p174, %p175
      %p177 = scmp.ne.s32.totalorder %s166, %s167
      %p178 = scmp.eq.s32.totalorder %s25, 0
      %p179 = por %p177, %p178
      %p180 = scmp.ne.s32.totalorder %s166, %s167
      %p181 = scmp.eq.s32.totalorder %s26, 3
      %p182 = por %p180, %p181
      %p184 = scmp.ne.s32.totalorder %s167, %s183
      %p185 = scmp.eq.s32.totalorder %s26, 0
      %p186 = por %p184, %p185
      %s187 = ssub.s32 %s27, %s39
      %s188 = ssub.s32 %s28, %s35
      %s189 = sor.u32 %s187, %s188
      %p190 = scmp.eq.s32.totalorder %s189, 0
      %s192 = sadd.s32 %s191, 1
      %s193 = scalar_select %p190, %s191, %s192
      %p196 = pneg %p190
      %p197 = scmp.eq.s32.totalorder %s20, 3
      %p198 = por %p196, %p197
      %p199 = scmp.ne.s32.totalorder %s191, %s194
      %p200 = scmp.eq.s32.totalorder %s20, 0
      %p201 = por %p199, %p200
      %p202 = scmp.ne.s32.totalorder %s191, %s194
      %p203 = scmp.eq.s32.totalorder %s25, 3
      %p204 = por %p202, %p203
      %p205 = scmp.ne.s32.totalorder %s194, %s195
      %p206 = scmp.eq.s32.totalorder %s25, 0
      %p207 = por %p205, %p206
      %p208 = scmp.ne.s32.totalorder %s194, %s195
      %p209 = scmp.eq.s32.totalorder %s26, 3
      %p210 = por %p208, %p209
      %p212 = scmp.ne.s32.totalorder %s195, %s211
      %p213 = scmp.eq.s32.totalorder %s26, 0
      %p214 = por %p212, %p213
      %s215 = ssub.s32 %s27, %s39
      %s216 = ssub.s32 %s28, %s35
      %s217 = sor.u32 %s215, %s216
      %p218 = scmp.eq.s32.totalorder %s217, 0
      %s220 = sadd.s32 %s219, 1
      %s221 = scalar_select %p218, %s219, %s220
      %p224 = pneg %p218
      %p225 = scmp.eq.s32.totalorder %s20, 3
      %p226 = por %p224, %p225
      %p227 = scmp.ne.s32.totalorder %s219, %s222
      %p228 = scmp.eq.s32.totalorder %s20, 0
      %p229 = por %p227, %p228
      %p230 = scmp.ne.s32.totalorder %s219, %s222
      %p231 = scmp.eq.s32.totalorder %s25, 3
      %p232 = por %p230, %p231
      %p233 = scmp.ne.s32.totalorder %s222, %s223
      %p234 = scmp.eq.s32.totalorder %s25, 0
      %p235 = por %p233, %p234
      %p236 = scmp.ne.s32.totalorder %s222, %s223
      %p237 = scmp.eq.s32.totalorder %s26, 3
      %p238 = por %p236, %p237
      %p240 = scmp.ne.s32.totalorder %s223, %s239
      %p241 = scmp.eq.s32.totalorder %s26, 0
      %p242 = por %p240, %p241
      %p243 = scmp.le.s32.totalorder 1, %s20
      %p244 = scmp.lt.s32.totalorder %s20, 5
      %p245 = pnand %p243, %p244
      %p246 = pneg %p245
      // Predicated region
      $region9: #{tpu_custom_call.1} parent=5 // pred_check
        _
      $region10: #{tpu_custom_call.1} parent=5 // pred_check_branch
        %248 = sbr.rel (%p245) target = $region12
      $region11: #{tpu_custom_call.1} parent=5 // pred_region
        %s249 = ssub.s32 %s20, 1
        // Predicated region
        $region13: #{tpu_custom_call.1} parent=11 // pred_check
          %p250 = pneg %p81
        $region14: #{tpu_custom_call.1} parent=11 // pred_check_branch
          %252 = sbr.rel (%p250) target = $region16
        $region15: #{tpu_custom_call.1} parent=11 // pred_region
          _
        $region16: #{tpu_custom_call.1} parent=11 // pred_fallthru
          _
        // Predicated region
        $region17: #{tpu_custom_call.1} parent=11 // pred_check
          %p253 = pneg %p102
        $region18: #{tpu_custom_call.1} parent=11 // pred_check_branch
          %255 = sbr.rel (%p253) target = $region20
        $region19: #{tpu_custom_call.1} parent=11 // pred_region
          _
        $region20: #{tpu_custom_call.1} parent=11 // pred_fallthru
          _
        // Predicated region
        $region21: #{tpu_custom_call.1} parent=11 // pred_check
          %p256 = pneg %p123
        $region22: #{tpu_custom_call.1} parent=11 // pred_check_branch
          %258 = sbr.rel (%p256) target = $region24
        $region23: #{tpu_custom_call.1} parent=11 // pred_region
          _
        $region24: #{tpu_custom_call.1} parent=11 // pred_fallthru
          _
      $region12: #{tpu_custom_call.1} parent=5 // pred_fallthru
        _
      %p259 = scmp.lt.s32.totalorder %s20, 4
      // Predicated region
      $region25: #{tpu_custom_call.1} parent=5 // pred_check
        %p260 = pneg %p259
      $region26: #{tpu_custom_call.1} parent=5 // pred_check_branch
        %262 = sbr.rel (%p260) target = $region28
      $region27: #{tpu_custom_call.1} parent=5 // pred_region
        // Predicated region
        $region29: #{tpu_custom_call.1} parent=27 // pred_check
          %p263 = pneg %p54
        $region30: #{tpu_custom_call.1} parent=27 // pred_check_branch
          %265 = sbr.rel (%p263) target = $region32
        $region31: #{tpu_custom_call.1} parent=27 // pred_region
          %s266 = sand.u32 %s44, 1
          %s267 = sand.u32 %s44, 1
          %s268 = smul.addr %s267, 32
          %s269 = scalar_lea.vmem [#allocation2], %s268
          %s270 = smul.addr %s27, 8
          %s271 = sadd.s32 %s28, %s270
          %s272 = smul.addr %s271, 8
          %s273 = scalar_lea.vmem %s0, %s272
          // Predicated region
          $region33: #{tpu_custom_call.1} parent=31 // pred_check
            _
          $region34: #{tpu_custom_call.1} parent=31 // pred_check_branch
            %275 = sbr.rel (0) target = $region36
          $region35: #{tpu_custom_call.1} parent=31 // pred_region
            // Predicated region
            $region37: #{tpu_custom_call.1} parent=35 // pred_check
              _
            $region38: #{tpu_custom_call.1} parent=35 // pred_check_branch
              %277 = sbr.rel (0) target = $region40
            $region39: #{tpu_custom_call.1} parent=35 // pred_region
              // Predicated region
              $region52: #{tpu_custom_call.1} parent=39 // pred_check
                _
              $region53: #{tpu_custom_call.1} parent=39 // pred_check_branch
                %299 = sbr.rel (0) target = $region55
              $region54: #{tpu_custom_call.1} parent=39 // pred_region
                loop: start=0, step=1, limit=1
                $region56: #{tpu_custom_call.1} parent=54 // loop_pre_header
                  _
                $region57: #{tpu_custom_call.1} parent=54 // loop_header
                  %s301 = sphi 0, %s305
                  %p302 = scmp.ge.s32.totalorder %s301, 1
                  %s306 = sphi %s273, %s273
                  %s307 = sphi %s269, %s269
                $region58: #{tpu_custom_call.1} parent=54 // loop_header_branch
                  %304 = sbr.rel (%p302) target = $region62
                $region59: #{tpu_custom_call.1} parent=54 // loop_body
                  %v308 = vld [vmem:[%s306] sm:$0xff]
                  %309 = vst [vmem:[%s307] sm:$0xff] %v308
                  %v310 = vld [vmem:[%s306 + $0x10] sm:$0xff]
                  %311 = vst [vmem:[%s307 + $0x8] sm:$0xff] %v310
                  %v312 = vld [vmem:[%s306 + $0x20] sm:$0xff]
                  %313 = vst [vmem:[%s307 + $0x10] sm:$0xff] %v312
                  %v314 = vld [vmem:[%s306 + $0x30] sm:$0xff]
                  %315 = vst [vmem:[%s307 + $0x18] sm:$0xff] %v314
                $region60: #{tpu_custom_call.1} parent=54 // loop_footer
                  %s305 = sadd.s32 1, %s301
                $region61: #{tpu_custom_call.1} parent=54 // loop_footer_branch
                  %300 = sbr.rel target = $region57
                $region62: #{tpu_custom_call.1} parent=54 // loop_exit
                  _
              $region55: #{tpu_custom_call.1} parent=39 // pred_fallthru
                _
              // Predicated region
              $region63: #{tpu_custom_call.1} parent=39 // pred_check
                _
              $region64: #{tpu_custom_call.1} parent=39 // pred_check_branch
                %317 = sbr.rel target = $region66
              $region65: #{tpu_custom_call.1} parent=39 // pred_region
                _
              $region66: #{tpu_custom_call.1} parent=39 // pred_fallthru
                _
            $region40: #{tpu_custom_call.1} parent=35 // pred_fallthru
              _
            // Predicated region
            $region41: #{tpu_custom_call.1} parent=35 // pred_check
              _
            $region42: #{tpu_custom_call.1} parent=35 // pred_check_branch
              %279 = sbr.rel target = $region44
            $region43: #{tpu_custom_call.1} parent=35 // pred_region
              %s281 = ssub.s32 256, 1
              loop: start=0, step=1, limit=1
              $region45: #{tpu_custom_call.1} parent=43 // loop_pre_header
                _
              $region46: #{tpu_custom_call.1} parent=43 // loop_header
                %s283 = sphi 0, %s287
                %p284 = scmp.ge.s32.totalorder %s283, 1
                %s288 = sphi %s273, %s273
                %s289 = sphi %s269, %s269
              $region47: #{tpu_custom_call.1} parent=43 // loop_header_branch
                %286 = sbr.rel (%p284) target = $region51
              $region48: #{tpu_custom_call.1} parent=43 // loop_body
                %v290 = vld [vmem:[%s288] sm:%s281]
                %291 = vst [vmem:[%s289] sm:%s281] %v290
                %v292 = vld [vmem:[%s288 + $0x10] sm:%s281]
                %293 = vst [vmem:[%s289 + $0x8] sm:%s281] %v292
                %v294 = vld [vmem:[%s288 + $0x20] sm:%s281]
                %295 = vst [vmem:[%s289 + $0x10] sm:%s281] %v294
                %v296 = vld [vmem:[%s288 + $0x30] sm:%s281]
                %297 = vst [vmem:[%s289 + $0x18] sm:%s281] %v296
              $region49: #{tpu_custom_call.1} parent=43 // loop_footer
                %s287 = sadd.s32 1, %s283
              $region50: #{tpu_custom_call.1} parent=43 // loop_footer_branch
                %282 = sbr.rel target = $region46
              $region51: #{tpu_custom_call.1} parent=43 // loop_exit
                _
            $region44: #{tpu_custom_call.1} parent=35 // pred_fallthru
              _
          $region36: #{tpu_custom_call.1} parent=31 // pred_fallthru
            _
          %318 = vnop
        $region32: #{tpu_custom_call.1} parent=27 // pred_fallthru
          _
      $region28: #{tpu_custom_call.1} parent=5 // pred_fallthru
        _
      %p319 = scmp.le.s32.totalorder 1, %s20
      %p320 = scmp.lt.s32.totalorder %s20, 5
      %p321 = pnand %p319, %p320
      %p322 = pneg %p321
      // Predicated region
      $region67: #{tpu_custom_call.1} parent=5 // pred_check
        _
      $region68: #{tpu_custom_call.1} parent=5 // pred_check_branch
        %324 = sbr.rel (%p321) target = $region70
      $region69: #{tpu_custom_call.1} parent=5 // pred_region
        %s325 = ssub.s32 %s20, 1
        %s326 = sand.u32 %s47, 1
        %s327 = sand.u32 %s47, 1
        %s328 = smul.addr %s327, 32
        %s329 = scalar_lea.vmem [#allocation2], %s328
        // Predicated region
        $region71: #{tpu_custom_call.1} parent=69 // pred_check
          %p330 = pneg %p60
        $region72: #{tpu_custom_call.1} parent=69 // pred_check_branch
          %332 = sbr.rel (%p330) target = $region74
        $region73: #{tpu_custom_call.1} parent=69 // pred_region
          _
        $region74: #{tpu_custom_call.1} parent=69 // pred_fallthru
          _
        %s333 = sand.u32 %s47, 1
        %s334 = sand.u32 %s47, 1
        %s335 = smul.addr %s334, 32
        %s336 = scalar_lea.vmem [#allocation2], %s335
        %p337 = pneg %p60
        %p338 = pneg %p57
        %p339 = pneg %p81
        %p340 = pneg %p78
        %p341 = pneg %p102
        %p342 = pneg %p99
        %p343 = pneg %p123
        %p344 = pneg %p120
        %p345 = pneg %p151
        %p346 = pneg %p148
        %s347 = sand.u32 %s138, 1
        %s348 = scalar_lea.sflag [#allocation4], %s347
        %s349 = sand.u32 %s138, 1
        %s350 = smul.addr %s349, 32
        %s351 = scalar_lea.vmem [#allocation3], %s350
        %p352 = pneg %p179
        %p353 = pneg %p176
        %s354 = sand.u32 %s25, 1
        %s355 = scalar_lea.sflag [#allocation6], %s354
        %s356 = sand.u32 %s166, 1
        %s357 = scalar_lea.vmem [#allocation5], %s356
        %p358 = pneg %p207
        %p359 = pneg %p204
        %s360 = sand.u32 %s25, 1
        %s361 = scalar_lea.sflag [#allocation6], %s360
        %s362 = sand.u32 %s194, 1
        %s363 = scalar_lea.vmem [#allocation7], %s362
        %p364 = pneg %p235
        %p365 = pneg %p232
        %p366 = scmp.lt.s32.totalorder %s29, 1
        %s367 = scalar_select %p366, %s29, 1
        %p368 = scmp.lt.s32.totalorder %s30, 1
        %s369 = scalar_select %p368, %s30, 1
        %s370 = smul.addr %s369, 16
        %s371 = smul.addr %s367, 32
        %s372 = sadd.s32 %s370, %s371
        %s373 = smul.addr %s372, 8
        %s374 = scalar_lea.vmem %s7, %s373
        %p375 = scmp.lt.s32.totalorder %s29, 1
        %s376 = scalar_select %p375, %s29, 1
        %p377 = scmp.lt.s32.totalorder %s30, 1
        %s378 = scalar_select %p377, %s30, 1
        %s379 = smul.addr %s378, 16
        %s380 = smul.addr %s376, 32
        %s381 = sadd.s32 %s379, %s380
        %s382 = smul.addr %s381, 8
        %s383 = scalar_lea.vmem %s7, %s382
        %v384 = vld [vmem:[%s329] sm:$0xff]
        %v385 = vld [vmem:[%s329 + $0x8] sm:$0xff]
        %v386 = vld [vmem:[%s329 + $0x10] sm:$0xff]
        %v387 = vld [vmem:[%s329 + $0x18] sm:$0xff]
        %v388 = vld [vmem:[%s1] sm:$0xff]
        %v389 = vld [vmem:[%s1 + $0x8] sm:$0xff]
        %v390 = vld [vmem:[%s1 + $0x10] sm:$0xff]
        %v391 = vld [vmem:[%s1 + $0x18] sm:$0xff]
        %v392 = vld [vmem:[%s1 + $0x20] sm:$0xff]
        %v393 = vld [vmem:[%s1 + $0x28] sm:$0xff]
        %v394 = vld [vmem:[%s1 + $0x30] sm:$0xff]
        %v395 = vld [vmem:[%s1 + $0x38] sm:$0xff]
        %v396 = vld [vmem:[%s1 + $0x40] sm:$0xff]
        %v397 = vld [vmem:[%s1 + $0x48] sm:$0xff]
        %v398 = vld [vmem:[%s1 + $0x50] sm:$0xff]
        %v399 = vld [vmem:[%s1 + $0x58] sm:$0xff]
        %v400 = vld [vmem:[%s1 + $0x60] sm:$0xff]
        %v401 = vld [vmem:[%s1 + $0x68] sm:$0xff]
        %v402 = vld [vmem:[%s1 + $0x70] sm:$0xff]
        %v403 = vld [vmem:[%s1 + $0x78] sm:$0xff]
        %v404 = vld [vmem:[%s2] sm:$0xff]
        %v405 = vld [vmem:[%s2 + $0x8] sm:$0xff]
        %v406 = vld [vmem:[%s2 + $0x10] sm:$0xff]
        %v407 = vld [vmem:[%s2 + $0x18] sm:$0xff]
        %v408 = vld [vmem:[%s3] sm:$0xff]
        %v409 = vld [vmem:[%s3 + $0x8] sm:$0xff]
        %v410 = vld [vmem:[%s3 + $0x10] sm:$0xff]
        %v411 = vld [vmem:[%s3 + $0x18] sm:$0xff]
        %v412 = vld [vmem:[%s3 + $0x20] sm:$0xff]
        %v413 = vld [vmem:[%s3 + $0x28] sm:$0xff]
        %v414 = vld [vmem:[%s3 + $0x30] sm:$0xff]
        %v415 = vld [vmem:[%s3 + $0x38] sm:$0xff]
        %v416 = vld [vmem:[%s3 + $0x40] sm:$0xff]
        %v417 = vld [vmem:[%s3 + $0x48] sm:$0xff]
        %v418 = vld [vmem:[%s3 + $0x50] sm:$0xff]
        %v419 = vld [vmem:[%s3 + $0x58] sm:$0xff]
        %v420 = vld [vmem:[%s3 + $0x60] sm:$0xff]
        %v421 = vld [vmem:[%s3 + $0x68] sm:$0xff]
        %v422 = vld [vmem:[%s3 + $0x70] sm:$0xff]
        %v423 = vld [vmem:[%s3 + $0x78] sm:$0xff]
        %v424 = vmul.f32 %v384, %v384
        %v425 = vmul.f32 %v385, %v385
        %v426 = vmul.f32 %v386, %v386
        %v427 = vmul.f32 %v387, %v387
        %v428 = vadd.f32 %v424, %v425
        %v429 = vadd.f32 %v428, %v426
        %v430 = vadd.f32 %v429, %v427
        %v431 = vrot.slane %v430, 4
        %v432 = vadd.f32 %v430, %v431
        %v433 = vrot.slane %v432, 2
        %v434 = vadd.f32 %v432, %v433
        %v435 = vrot.slane %v434, 1
        %v436 = vadd.f32 %v434, %v435
        %v437 = vrsqrt.pop %v436
        %v438 = vmul.f32 %v437, %v436
        %v439 = vmul.f32 %v438, %v437
        %v440 = vmul.f32 0.5, %v439
        %v441 = vsub.f32 1.5, %v440
        %v442 = vmul.f32 %v437, %v441
        %v443 = vmul.f32 %v436, %v442
        %vm444 = vcmp.eq.f32.partialorder %v436, inf
        %v445 = vsel %vm444, %v436, %v443
        %vm446 = vcmp.eq.f32.partialorder %v436, 0.0
        %v447 = vand.u32 %v436, 2147483648
        %v448 = vsel %vm446, %v447, %v445
        %v449 = vmax.f32 %v448, 1e-12
        %v450 = vrcp.pop %v449
        %v451 = vmul.f32 %v449, %v450
        %v452 = vsub.f32 1.0, %v451
        %v453 = vmul.f32 %v450, %v452
        %v454 = vadd.f32 %v450, %v453
        %vm455 = vweird.f32 %v449
        %vm456 = vweird.f32 %v450
        %vm457 = vmor %vm455, %vm456
        %v458 = vsel %vm457, %v450, %v454
        %v459 = vand.u32 2147483647, %v449
        %vm460 = vcmp.eq.f32.partialorder %v459, 8.507059e+37
        %v461 = vand.u32 %v449, 2147483648
        %v462 = vor.u32 1.1754944e-38, %v461
        %v463 = vsel %vm460, %v462, %v458
        %v464 = vmul.f32 %v384, %v463
        %v465 = vmul.f32 %v385, %v463
        %v466 = vmul.f32 %v386, %v463
        %v467 = vmul.f32 %v387, %v463
        %v468 = vmul.f32 %v449, %v449
        %v469 = vrcp.pop %v468
        %v470 = vmul.f32 %v468, %v469
        %v471 = vsub.f32 1.0, %v470
        %v472 = vmul.f32 %v469, %v471
        %v473 = vadd.f32 %v469, %v472
        %vm474 = vweird.f32 %v468
        %vm475 = vweird.f32 %v469
        %vm476 = vmor %vm474, %vm475
        %v477 = vsel %vm476, %v469, %v473
        %v478 = vand.u32 2147483647, %v468
        %vm479 = vcmp.eq.f32.partialorder %v478, 8.507059e+37
        %v480 = vand.u32 %v468, 2147483648
        %v481 = vor.u32 1.1754944e-38, %v480
        %v482 = vsel %vm479, %v481, %v477
        %v483 = vmul.f32 %v436, %v482
        %vm484 = vcmask 261120
        %v486 = vsel %vm484, %v388, 0
        %v489 = vsel %vm484, %v389, 0
        %v492 = vsel %vm484, %v390, 0
        %v495 = vsel %vm484, %v391, 0
        %v498 = vsel %vm484, %v392, 0
        %v501 = vsel %vm484, %v393, 0
        %v504 = vsel %vm484, %v394, 0
        %v507 = vsel %vm484, %v395, 0
        %v510 = vsel %vm484, %v396, 0
        %v513 = vsel %vm484, %v397, 0
        %v516 = vsel %vm484, %v398, 0
        %v519 = vsel %vm484, %v399, 0
        %v522 = vsel %vm484, %v400, 0
        %v525 = vsel %vm484, %v401, 0
        %v528 = vsel %vm484, %v402, 0
        %v531 = vsel %vm484, %v403, 0
        %533 = vmatpush.msra.mxu0 0.0
        %534 = vmatpush.msra.mxu0 0.0
        %535 = vmatpush.msra.mxu0 0.0
        %536 = vmatpush.msra.mxu0 0.0
        %537 = vmatpush.msra.mxu0 0.0
        %538 = vmatpush.msra.mxu0 0.0
        %539 = vmatpush.msra.mxu0 0.0
        %540 = vmatpush.msra.mxu0 0.0
        %541 = vmatpush.msra.mxu0 0.0
        %542 = vmatpush.msra.mxu0 0.0
        %543 = vmatpush.msra.mxu0 0.0
        %544 = vmatpush.msra.mxu0 0.0
        %545 = vmatpush.msra.mxu0 %v467
        %546 = vmatpush.msra.mxu0 %v466
        %547 = vmatpush.msra.mxu0 %v465
        %548 = vmatpush.msra.mxu0 %v464
        %549 = vmatmul.f32.gmra.mxu0 %v486
        %v550 = vpop.f32.mrf.mxu0
        %v551 = vadd.f32 0.0, %v550
        %552 = vmatmul.f32.gmra.mxu0 %v489
        %v553 = vpop.f32.mrf.mxu0
        %v554 = vadd.f32 0.0, %v553
        %555 = vmatmul.f32.gmra.mxu0 %v492
        %v556 = vpop.f32.mrf.mxu0
        %v557 = vadd.f32 0.0, %v556
        %558 = vmatmul.f32.gmra.mxu0 %v495
        %v559 = vpop.f32.mrf.mxu0
        %v560 = vadd.f32 0.0, %v559
        %561 = vmatmul.f32.gmra.mxu0 %v498
        %v562 = vpop.f32.mrf.mxu0
        %v563 = vadd.f32 0.0, %v562
        %564 = vmatmul.f32.gmra.mxu0 %v501
        %v565 = vpop.f32.mrf.mxu0
        %v566 = vadd.f32 0.0, %v565
        %567 = vmatmul.f32.gmra.mxu0 %v504
        %v568 = vpop.f32.mrf.mxu0
        %v569 = vadd.f32 0.0, %v568
        %570 = vmatmul.f32.gmra.mxu0 %v507
        %v571 = vpop.f32.mrf.mxu0
        %v572 = vadd.f32 0.0, %v571
        %573 = vmatmul.f32.gmra.mxu0 %v510
        %v574 = vpop.f32.mrf.mxu0
        %v575 = vadd.f32 0.0, %v574
        %576 = vmatmul.f32.gmra.mxu0 %v513
        %v577 = vpop.f32.mrf.mxu0
        %v578 = vadd.f32 0.0, %v577
        %579 = vmatmul.f32.gmra.mxu0 %v516
        %v580 = vpop.f32.mrf.mxu0
        %v581 = vadd.f32 0.0, %v580
        %582 = vmatmul.f32.gmra.mxu0 %v519
        %v583 = vpop.f32.mrf.mxu0
        %v584 = vadd.f32 0.0, %v583
        %585 = vmatmul.f32.gmra.mxu0 %v522
        %v586 = vpop.f32.mrf.mxu0
        %v587 = vadd.f32 0.0, %v586
        %588 = vmatmul.f32.gmra.mxu0 %v525
        %v589 = vpop.f32.mrf.mxu0
        %v590 = vadd.f32 0.0, %v589
        %591 = vmatmul.f32.gmra.mxu0 %v528
        %v592 = vpop.f32.mrf.mxu0
        %v593 = vadd.f32 0.0, %v592
        %594 = vmatmul.f32.gmra.mxu0 %v531
        %v595 = vpop.f32.mrf.mxu0
        %v596 = vadd.f32 0.0, %v595
        %597 = vdwg.mxu0
        %v598 = vmul.f32 %v551, 2.0
        %v599 = vmul.f32 %v554, 2.0
        %v600 = vmul.f32 %v557, 2.0
        %v601 = vmul.f32 %v560, 2.0
        %v602 = vmul.f32 %v563, 2.0
        %v603 = vmul.f32 %v566, 2.0
        %v604 = vmul.f32 %v569, 2.0
        %v605 = vmul.f32 %v572, 2.0
        %v606 = vmul.f32 %v575, 2.0
        %v607 = vmul.f32 %v578, 2.0
        %v608 = vmul.f32 %v581, 2.0
        %v609 = vmul.f32 %v584, 2.0
        %v610 = vmul.f32 %v587, 2.0
        %v611 = vmul.f32 %v590, 2.0
        %v612 = vmul.f32 %v593, 2.0
        %v613 = vmul.f32 %v596, 2.0
        %615 = vset.pattern.permute.xlu0 0
        %616 = vperm.xlu0 %615, %v408
        %v617 = vpop.permute.xlu0 %616
        %620 = vset.pattern.permute.xlu0 0
        %621 = vperm.xlu0 %620, %v409
        %v622 = vpop.permute.xlu0 %621
        %625 = vset.pattern.permute.xlu0 0
        %626 = vperm.xlu0 %625, %v410
        %v627 = vpop.permute.xlu0 %626
        %630 = vset.pattern.permute.xlu0 0
        %631 = vperm.xlu0 %630, %v411
        %v632 = vpop.permute.xlu0 %631
        %635 = vset.pattern.permute.xlu0 0
        %636 = vperm.xlu0 %635, %v412
        %v637 = vpop.permute.xlu0 %636
        %640 = vset.pattern.permute.xlu0 0
        %641 = vperm.xlu0 %640, %v413
        %v642 = vpop.permute.xlu0 %641
        %645 = vset.pattern.permute.xlu0 0
        %646 = vperm.xlu0 %645, %v414
        %v647 = vpop.permute.xlu0 %646
        %650 = vset.pattern.permute.xlu0 0
        %651 = vperm.xlu0 %650, %v415
        %v652 = vpop.permute.xlu0 %651
        %655 = vset.pattern.permute.xlu0 0
        %656 = vperm.xlu0 %655, %v416
        %v657 = vpop.permute.xlu0 %656
        %660 = vset.pattern.permute.xlu0 0
        %661 = vperm.xlu0 %660, %v417
        %v662 = vpop.permute.xlu0 %661
        %665 = vset.pattern.permute.xlu0 0
        %666 = vperm.xlu0 %665, %v418
        %v667 = vpop.permute.xlu0 %666
        %670 = vset.pattern.permute.xlu0 0
        %671 = vperm.xlu0 %670, %v419
        %v672 = vpop.permute.xlu0 %671
        %675 = vset.pattern.permute.xlu0 0
        %676 = vperm.xlu0 %675, %v420
        %v677 = vpop.permute.xlu0 %676
        %680 = vset.pattern.permute.xlu0 0
        %681 = vperm.xlu0 %680, %v421
        %v682 = vpop.permute.xlu0 %681
        %685 = vset.pattern.permute.xlu0 0
        %686 = vperm.xlu0 %685, %v422
        %v687 = vpop.permute.xlu0 %686
        %690 = vset.pattern.permute.xlu0 0
        %691 = vperm.xlu0 %690, %v423
        %v692 = vpop.permute.xlu0 %691
        %v694 = vsub.f32 %v617, %v598
        %v695 = vsub.f32 %v622, %v599
        %v696 = vsub.f32 %v627, %v600
        %v697 = vsub.f32 %v632, %v601
        %v698 = vsub.f32 %v637, %v602
        %v699 = vsub.f32 %v642, %v603
        %v700 = vsub.f32 %v647, %v604
        %v701 = vsub.f32 %v652, %v605
        %v702 = vsub.f32 %v657, %v606
        %v703 = vsub.f32 %v662, %v607
        %v704 = vsub.f32 %v667, %v608
        %v705 = vsub.f32 %v672, %v609
        %v706 = vsub.f32 %v677, %v610
        %v707 = vsub.f32 %v682, %v611
        %v708 = vsub.f32 %v687, %v612
        %v709 = vsub.f32 %v692, %v613
        %v710 = vmin.f32 %v694, %v698
        %v711 = vmin.f32 %v695, %v699
        %v712 = vmin.f32 %v696, %v700
        %v713 = vmin.f32 %v697, %v701
        %v714 = vmin.f32 %v710, %v702
        %v715 = vmin.f32 %v711, %v703
        %v716 = vmin.f32 %v712, %v704
        %v717 = vmin.f32 %v713, %v705
        %v718 = vmin.f32 %v714, %v706
        %v719 = vmin.f32 %v715, %v707
        %v720 = vmin.f32 %v716, %v708
        %v721 = vmin.f32 %v717, %v709
        %v722 = vmin.f32 %v718, %v719
        %v723 = vmin.f32 %v720, %v721
        %v724 = vmin.f32 %v722, %v723
        %v725 = vrot.slane %v724, 4
        %v726 = vmin.f32 %v724, %v725
        %v727 = vrot.slane %v726, 2
        %v728 = vmin.f32 %v726, %v727
        %v729 = vrot.slane %v728, 1
        %v730 = vmin.f32 %v728, %v729
        %v731 = vlaneseq
        %v732 = vshrl.u32 %v731, 7
        %v733 = vadd.s32 %v732, 8
        %v734 = vadd.s32 %v732, 16
        %v735 = vadd.s32 %v732, 24
        %v736 = vadd.s32 %v732, 32
        %v737 = vadd.s32 %v732, 40
        %v738 = vadd.s32 %v732, 48
        %v739 = vadd.s32 %v732, 56
        %v740 = vadd.s32 %v732, 64
        %v741 = vadd.s32 %v732, 72
        %v742 = vadd.s32 %v732, 80
        %v743 = vadd.s32 %v732, 88
        %v744 = vadd.s32 %v732, 96
        %v745 = vadd.s32 %v732, 104
        %v746 = vadd.s32 %v732, 112
        %v747 = vadd.s32 %v732, 120
        %vm748 = vcmp.eq.f32.partialorder %v694, %v730
        %vm749 = vcmp.eq.f32.partialorder %v695, %v730
        %vm750 = vcmp.eq.f32.partialorder %v696, %v730
        %vm751 = vcmp.eq.f32.partialorder %v697, %v730
        %vm752 = vcmp.eq.f32.partialorder %v698, %v730
        %vm753 = vcmp.eq.f32.partialorder %v699, %v730
        %vm754 = vcmp.eq.f32.partialorder %v700, %v730
        %vm755 = vcmp.eq.f32.partialorder %v701, %v730
        %vm756 = vcmp.eq.f32.partialorder %v702, %v730
        %vm757 = vcmp.eq.f32.partialorder %v703, %v730
        %vm758 = vcmp.eq.f32.partialorder %v704, %v730
        %vm759 = vcmp.eq.f32.partialorder %v705, %v730
        %vm760 = vcmp.eq.f32.partialorder %v706, %v730
        %vm761 = vcmp.eq.f32.partialorder %v707, %v730
        %vm762 = vcmp.eq.f32.partialorder %v708, %v730
        %vm763 = vcmp.eq.f32.partialorder %v709, %v730
        %v764 = vsel %vm748, %v732, 128
        %v765 = vsel %vm749, %v733, 128
        %v766 = vsel %vm750, %v734, 128
        %v767 = vsel %vm751, %v735, 128
        %v768 = vsel %vm752, %v736, 128
        %v769 = vsel %vm753, %v737, 128
        %v770 = vsel %vm754, %v738, 128
        %v771 = vsel %vm755, %v739, 128
        %v772 = vsel %vm756, %v740, 128
        %v773 = vsel %vm757, %v741, 128
        %v774 = vsel %vm758, %v742, 128
        %v775 = vsel %vm759, %v743, 128
        %v776 = vsel %vm760, %v744, 128
        %v777 = vsel %vm761, %v745, 128
        %v778 = vsel %vm762, %v746, 128
        %v779 = vsel %vm763, %v747, 128
        %vm780 = vcmp.lt.s32.totalorder %v764, %v768
        %v781 = vsel %vm780, %v764, %v768
        %vm782 = vcmp.lt.s32.totalorder %v765, %v769
        %v783 = vsel %vm782, %v765, %v769
        %vm784 = vcmp.lt.s32.totalorder %v766, %v770
        %v785 = vsel %vm784, %v766, %v770
        %vm786 = vcmp.lt.s32.totalorder %v767, %v771
        %v787 = vsel %vm786, %v767, %v771
        %vm788 = vcmp.lt.s32.totalorder %v781, %v772
        %v789 = vsel %vm788, %v781, %v772
        %vm790 = vcmp.lt.s32.totalorder %v783, %v773
        %v791 = vsel %vm790, %v783, %v773
        %vm792 = vcmp.lt.s32.totalorder %v785, %v774
        %v793 = vsel %vm792, %v785, %v774
        %vm794 = vcmp.lt.s32.totalorder %v787, %v775
        %v795 = vsel %vm794, %v787, %v775
        %vm796 = vcmp.lt.s32.totalorder %v789, %v776
        %v797 = vsel %vm796, %v789, %v776
        %vm798 = vcmp.lt.s32.totalorder %v791, %v777
        %v799 = vsel %vm798, %v791, %v777
        %vm800 = vcmp.lt.s32.totalorder %v793, %v778
        %v801 = vsel %vm800, %v793, %v778
        %vm802 = vcmp.lt.s32.totalorder %v795, %v779
        %v803 = vsel %vm802, %v795, %v779
        %vm804 = vcmp.lt.s32.totalorder %v797, %v799
        %v805 = vsel %vm804, %v797, %v799
        %vm806 = vcmp.lt.s32.totalorder %v801, %v803
        %v807 = vsel %vm806, %v801, %v803
        %vm808 = vcmp.lt.s32.totalorder %v805, %v807
        %v809 = vsel %vm808, %v805, %v807
        %v810 = vrot.slane %v809, 4
        %vm811 = vcmp.lt.s32.totalorder %v809, %v810
        %v812 = vsel %vm811, %v809, %v810
        %v813 = vrot.slane %v812, 2
        %vm814 = vcmp.lt.s32.totalorder %v812, %v813
        %v815 = vsel %vm814, %v812, %v813
        %v816 = vrot.slane %v815, 1
        %vm817 = vcmp.lt.s32.totalorder %v815, %v816
        %v818 = vsel %vm817, %v815, %v816
        %vm819 = vcmp.eq.s32.totalorder %v732, %v818
        %vm820 = vcmp.eq.s32.totalorder %v733, %v818
        %vm821 = vcmp.eq.s32.totalorder %v734, %v818
        %vm822 = vcmp.eq.s32.totalorder %v735, %v818
        %vm823 = vcmp.eq.s32.totalorder %v736, %v818
        %vm824 = vcmp.eq.s32.totalorder %v737, %v818
        %vm825 = vcmp.eq.s32.totalorder %v738, %v818
        %vm826 = vcmp.eq.s32.totalorder %v739, %v818
        %vm827 = vcmp.eq.s32.totalorder %v740, %v818
        %vm828 = vcmp.eq.s32.totalorder %v741, %v818
        %vm829 = vcmp.eq.s32.totalorder %v742, %v818
        %vm830 = vcmp.eq.s32.totalorder %v743, %v818
        %vm831 = vcmp.eq.s32.totalorder %v744, %v818
        %vm832 = vcmp.eq.s32.totalorder %v745, %v818
        %vm833 = vcmp.eq.s32.totalorder %v746, %v818
        %vm834 = vcmp.eq.s32.totalorder %v747, %v818
        %v835 = vsel %vm819, 1, 0
        %v836 = vsel %vm820, 1, 0
        %v837 = vsel %vm821, 1, 0
        %v838 = vsel %vm822, 1, 0
        %v839 = vsel %vm823, 1, 0
        %v840 = vsel %vm824, 1, 0
        %v841 = vsel %vm825, 1, 0
        %v842 = vsel %vm826, 1, 0
        %v843 = vsel %vm827, 1, 0
        %v844 = vsel %vm828, 1, 0
        %v845 = vsel %vm829, 1, 0
        %v846 = vsel %vm830, 1, 0
        %v847 = vsel %vm831, 1, 0
        %v848 = vsel %vm832, 1, 0
        %v849 = vsel %vm833, 1, 0
        %v850 = vsel %vm834, 1, 0
        %v851 = vcvt.s32.f32 %v835
        %v852 = vcvt.s32.f32 %v836
        %v853 = vcvt.s32.f32 %v837
        %v854 = vcvt.s32.f32 %v838
        %v855 = vcvt.s32.f32 %v839
        %v856 = vcvt.s32.f32 %v840
        %v857 = vcvt.s32.f32 %v841
        %v858 = vcvt.s32.f32 %v842
        %v859 = vcvt.s32.f32 %v843
        %v860 = vcvt.s32.f32 %v844
        %v861 = vcvt.s32.f32 %v845
        %v862 = vcvt.s32.f32 %v846
        %v863 = vcvt.s32.f32 %v847
        %v864 = vcvt.s32.f32 %v848
        %v865 = vcvt.s32.f32 %v849
        %v866 = vcvt.s32.f32 %v850
        %v867 = vadd.f32 %v483, %v730
        %868 = vmatpush.msra.mxu0 %v866
        %869 = vmatpush.msra.mxu0 %v865
        %870 = vmatpush.msra.mxu0 %v864
        %871 = vmatpush.msra.mxu0 %v863
        %872 = vmatpush.msra.mxu0 %v862
        %873 = vmatpush.msra.mxu0 %v861
        %874 = vmatpush.msra.mxu0 %v860
        %875 = vmatpush.msra.mxu0 %v859
        %876 = vmatpush.msra.mxu0 %v858
        %877 = vmatpush.msra.mxu0 %v857
        %878 = vmatpush.msra.mxu0 %v856
        %879 = vmatpush.msra.mxu0 %v855
        %880 = vmatpush.msra.mxu0 %v854
        %881 = vmatpush.msra.mxu0 %v853
        %882 = vmatpush.msra.mxu0 %v852
        %883 = vmatpush.msra.mxu0 %v851
        %884 = vmatmul.f32.gmra.mxu0 %v404
        %v885 = vpop.f32.mrf.mxu0
        %v886 = vadd.f32 0.0, %v885
        %887 = vmatmul.f32.gmra.mxu0 %v405
        %v888 = vpop.f32.mrf.mxu0
        %v889 = vadd.f32 0.0, %v888
        %890 = vmatmul.f32.gmra.mxu0 %v406
        %v891 = vpop.f32.mrf.mxu0
        %v892 = vadd.f32 0.0, %v891
        %893 = vmatmul.f32.gmra.mxu0 %v407
        %v894 = vpop.f32.mrf.mxu0
        %v895 = vadd.f32 0.0, %v894
        %896 = vdwg.mxu0
        %897 = vst [vmem:[%s351] sm:$0xff] %v886
        %898 = vst [vmem:[%s351 + $0x8] sm:$0xff] %v889
        %899 = vst [vmem:[%s351 + $0x10] sm:$0xff] %v892
        %900 = vst [vmem:[%s351 + $0x18] sm:$0xff] %v895
        %901 = vst [vmem:[%s357] sm:$0x1] %v818
        %902 = vst [vmem:[%s363] sm:$0x1] %v867
        %903 = vmatpush.msra.mxu0 1.0
        %904 = vmatpush.msra.mxu0 1.0
        %905 = vmatpush.msra.mxu0 1.0
        %906 = vmatpush.msra.mxu0 1.0
        %907 = vmatpush.msra.mxu0 1.0
        %908 = vmatpush.msra.mxu0 1.0
        %909 = vmatpush.msra.mxu0 1.0
        %910 = vmatpush.msra.mxu0 1.0
        %911 = vmatpush.msra.mxu0 1.0
        %912 = vmatpush.msra.mxu0 1.0
        %913 = vmatpush.msra.mxu0 1.0
        %914 = vmatpush.msra.mxu0 1.0
        %915 = vmatpush.msra.mxu0 1.0
        %916 = vmatpush.msra.mxu0 1.0
        %917 = vmatpush.msra.mxu0 1.0
        %918 = vmatpush.msra.mxu0 1.0
        %919 = vmatmul.f32.gmra.mxu0 %v851
        %v920 = vpop.f32.mrf.mxu0
        %v921 = vadd.f32 0.0, %v920
        %922 = vmatmul.f32.gmra.mxu0 %v852
        %v923 = vpop.f32.mrf.mxu0
        %v924 = vadd.f32 0.0, %v923
        %925 = vmatmul.f32.gmra.mxu0 %v853
        %v926 = vpop.f32.mrf.mxu0
        %v927 = vadd.f32 0.0, %v926
        %928 = vmatmul.f32.gmra.mxu0 %v854
        %v929 = vpop.f32.mrf.mxu0
        %v930 = vadd.f32 0.0, %v929
        %931 = vmatmul.f32.gmra.mxu0 %v855
        %v932 = vpop.f32.mrf.mxu0
        %v933 = vadd.f32 0.0, %v932
        %934 = vmatmul.f32.gmra.mxu0 %v856
        %v935 = vpop.f32.mrf.mxu0
        %v936 = vadd.f32 0.0, %v935
        %937 = vmatmul.f32.gmra.mxu0 %v857
        %v938 = vpop.f32.mrf.mxu0
        %v939 = vadd.f32 0.0, %v938
        %940 = vmatmul.f32.gmra.mxu0 %v858
        %v941 = vpop.f32.mrf.mxu0
        %v942 = vadd.f32 0.0, %v941
        %943 = vmatmul.f32.gmra.mxu0 %v859
        %v944 = vpop.f32.mrf.mxu0
        %v945 = vadd.f32 0.0, %v944
        %946 = vmatmul.f32.gmra.mxu0 %v860
        %v947 = vpop.f32.mrf.mxu0
        %v948 = vadd.f32 0.0, %v947
        %949 = vmatmul.f32.gmra.mxu0 %v861
        %v950 = vpop.f32.mrf.mxu0
        %v951 = vadd.f32 0.0, %v950
        %952 = vmatmul.f32.gmra.mxu0 %v862
        %v953 = vpop.f32.mrf.mxu0
        %v954 = vadd.f32 0.0, %v953
        %955 = vmatmul.f32.gmra.mxu0 %v863
        %v956 = vpop.f32.mrf.mxu0
        %v957 = vadd.f32 0.0, %v956
        %958 = vmatmul.f32.gmra.mxu0 %v864
        %v959 = vpop.f32.mrf.mxu0
        %v960 = vadd.f32 0.0, %v959
        %961 = vmatmul.f32.gmra.mxu0 %v865
        %v962 = vpop.f32.mrf.mxu0
        %v963 = vadd.f32 0.0, %v962
        %964 = vmatmul.f32.gmra.mxu0 %v866
        %v965 = vpop.f32.mrf.mxu0
        %v966 = vadd.f32 0.0, %v965
        %967 = vdwg.mxu0
        %vm968 = vcmask 64512
        %969 = vst.msk [vmem:[%s383] sm:$0xff] %vm968, %v921
        %970 = vst.msk [vmem:[%s383 + $0x8] sm:$0xff] %vm968, %v924
        %971 = vst.msk [vmem:[%s383 + $0x10] sm:$0xff] %vm968, %v927
        %972 = vst.msk [vmem:[%s383 + $0x18] sm:$0xff] %vm968, %v930
        %973 = vst.msk [vmem:[%s383 + $0x20] sm:$0xff] %vm968, %v933
        %974 = vst.msk [vmem:[%s383 + $0x28] sm:$0xff] %vm968, %v936
        %975 = vst.msk [vmem:[%s383 + $0x30] sm:$0xff] %vm968, %v939
        %976 = vst.msk [vmem:[%s383 + $0x38] sm:$0xff] %vm968, %v942
        %977 = vst.msk [vmem:[%s383 + $0x40] sm:$0xff] %vm968, %v945
        %978 = vst.msk [vmem:[%s383 + $0x48] sm:$0xff] %vm968, %v948
        %979 = vst.msk [vmem:[%s383 + $0x50] sm:$0xff] %vm968, %v951
        %980 = vst.msk [vmem:[%s383 + $0x58] sm:$0xff] %vm968, %v954
        %981 = vst.msk [vmem:[%s383 + $0x60] sm:$0xff] %vm968, %v957
        %982 = vst.msk [vmem:[%s383 + $0x68] sm:$0xff] %vm968, %v960
        %983 = vst.msk [vmem:[%s383 + $0x70] sm:$0xff] %vm968, %v963
        %984 = vst.msk [vmem:[%s383 + $0x78] sm:$0xff] %vm968, %v966
        %s985 = sand.u32 %s138, 1
        %s986 = scalar_lea.sflag [#allocation4], %s985
        %s987 = sand.u32 %s138, 1
        %s988 = smul.addr %s987, 32
        %s989 = scalar_lea.vmem [#allocation3], %s988
        %s990 = sand.u32 %s25, 1
        %s991 = scalar_lea.sflag [#allocation6], %s990
        %s992 = sand.u32 %s166, 1
        %s993 = scalar_lea.vmem [#allocation5], %s992
        %s994 = sand.u32 %s25, 1
        %s995 = scalar_lea.sflag [#allocation6], %s994
        %s996 = sand.u32 %s194, 1
        %s997 = scalar_lea.vmem [#allocation7], %s996
        %p998 = scmp.lt.s32.totalorder %s29, 1
        %s999 = scalar_select %p998, %s29, 1
        %p1000 = scmp.lt.s32.totalorder %s30, 1
        %s1001 = scalar_select %p1000, %s30, 1
        %s1002 = smul.addr %s1001, 16
        %s1003 = smul.addr %s999, 32
        %s1004 = sadd.s32 %s1002, %s1003
        %s1005 = smul.addr %s1004, 8
        %s1006 = scalar_lea.vmem %s7, %s1005
        // Predicated region
        $region75: #{tpu_custom_call.1} parent=69 // pred_check
          %p1007 = pneg %p148
        $region76: #{tpu_custom_call.1} parent=69 // pred_check_branch
          %1009 = sbr.rel (%p1007) target = $region78
        $region77: #{tpu_custom_call.1} parent=69 // pred_region
          %1011 = vsyncadd %s986, 0
          %s1012 = smul.addr %s29, 8
          %s1013 = sadd.s32 %s30, %s1012
          %s1014 = smul.addr %s1013, 8
          %s1015 = scalar_lea.hbm %s4, %s1014
          %s1016 = sshll.u32 %s989, 4
          %s1017 = int_to_ptr.vmem [resolvable:$true] %s1016
          %s1018 = sshll.u32 %s1015, 4
          %s1019 = int_to_ptr.hbm [resolvable:$true] %s1018
          %1024 = dma.vmem_to_hbm [thread:$0]  %s1017, 512, %s1019, %s986, 128, 256, 8
        $region78: #{tpu_custom_call.1} parent=69 // pred_fallthru
          _
        // Predicated region
        $region79: #{tpu_custom_call.1} parent=69 // pred_check
          %p1025 = pneg %p176
        $region80: #{tpu_custom_call.1} parent=69 // pred_check_branch
          %1027 = sbr.rel (%p1025) target = $region82
        $region81: #{tpu_custom_call.1} parent=69 // pred_region
          %1029 = vsyncadd %s991, 0
          %s1030 = smul.addr %s29, 2
          %s1031 = sadd.s32 %s30, %s1030
          %s1032 = scalar_lea.hbm %s5, %s1031
          %s1034 = sshll.u32 %s993, 4
          %s1035 = int_to_ptr.vmem [resolvable:$true] %s1034
          %s1036 = sshll.u32 %s1032, 4
          %s1037 = int_to_ptr.hbm [resolvable:$true] %s1036
          %1039 = dma.vmem_to_hbm [thread:$0]  %s1035, 16, %s1037, %s991
        $region82: #{tpu_custom_call.1} parent=69 // pred_fallthru
          _
        // Predicated region
        $region83: #{tpu_custom_call.1} parent=69 // pred_check
          %p1040 = pneg %p204
        $region84: #{tpu_custom_call.1} parent=69 // pred_check_branch
          %1042 = sbr.rel (%p1040) target = $region86
        $region85: #{tpu_custom_call.1} parent=69 // pred_region
          %1044 = vsyncadd %s995, 0
          %s1045 = smul.addr %s29, 2
          %s1046 = sadd.s32 %s30, %s1045
          %s1047 = scalar_lea.hbm %s6, %s1046
          %s1049 = sshll.u32 %s997, 4
          %s1050 = int_to_ptr.vmem [resolvable:$true] %s1049
          %s1051 = sshll.u32 %s1047, 4
          %s1052 = int_to_ptr.hbm [resolvable:$true] %s1051
          %1054 = dma.vmem_to_hbm [thread:$0]  %s1050, 16, %s1052, %s995
        $region86: #{tpu_custom_call.1} parent=69 // pred_fallthru
          _
        // Predicated region
        $region87: #{tpu_custom_call.1} parent=69 // pred_check
          %p1055 = pneg %p232
        $region88: #{tpu_custom_call.1} parent=69 // pred_check_branch
          %1057 = sbr.rel (%p1055) target = $region90
        $region89: #{tpu_custom_call.1} parent=69 // pred_region
          _
        $region90: #{tpu_custom_call.1} parent=69 // pred_fallthru
          _
      $region70: #{tpu_custom_call.1} parent=5 // pred_fallthru
        _
      %p1058 = scmp.le.s32.totalorder 2, %s20
      // Predicated region
      $region91: #{tpu_custom_call.1} parent=5 // pred_check
        %p1059 = pneg %p1058
      $region92: #{tpu_custom_call.1} parent=5 // pred_check_branch
        %1061 = sbr.rel (%p1059) target = $region94
      $region93: #{tpu_custom_call.1} parent=5 // pred_region
        %s1062 = ssub.s32 %s20, 2
        // Predicated region
        $region95: #{tpu_custom_call.1} parent=93 // pred_check
          %p1063 = pneg %p154
        $region96: #{tpu_custom_call.1} parent=93 // pred_check_branch
          %1065 = sbr.rel (%p1063) target = $region98
        $region97: #{tpu_custom_call.1} parent=93 // pred_region
          %s1066 = sand.u32 %s139, 1
          %s1067 = scalar_lea.sflag [#allocation4], %s1066
          %s1068 = sand.u32 %s139, 1
          %s1069 = smul.addr %s1068, 32
          %s1070 = scalar_lea.vmem [#allocation3], %s1069
          %1072 = dma.done %s1067, 512
        $region98: #{tpu_custom_call.1} parent=93 // pred_fallthru
          _
        // Predicated region
        $region99: #{tpu_custom_call.1} parent=93 // pred_check
          %p1073 = pneg %p182
        $region100: #{tpu_custom_call.1} parent=93 // pred_check_branch
          %1075 = sbr.rel (%p1073) target = $region102
        $region101: #{tpu_custom_call.1} parent=93 // pred_region
          %s1076 = sand.u32 %s26, 1
          %s1077 = scalar_lea.sflag [#allocation6], %s1076
          %s1078 = sand.u32 %s167, 1
          %s1079 = scalar_lea.vmem [#allocation5], %s1078
          %1081 = dma.done %s1077, 16
        $region102: #{tpu_custom_call.1} parent=93 // pred_fallthru
          _
        // Predicated region
        $region103: #{tpu_custom_call.1} parent=93 // pred_check
          %p1082 = pneg %p210
        $region104: #{tpu_custom_call.1} parent=93 // pred_check_branch
          %1084 = sbr.rel (%p1082) target = $region106
        $region105: #{tpu_custom_call.1} parent=93 // pred_region
          %s1085 = sand.u32 %s26, 1
          %s1086 = scalar_lea.sflag [#allocation6], %s1085
          %s1087 = sand.u32 %s195, 1
          %s1088 = scalar_lea.vmem [#allocation7], %s1087
          %1090 = dma.done %s1086, 16
        $region106: #{tpu_custom_call.1} parent=93 // pred_fallthru
          _
        // Predicated region
        $region107: #{tpu_custom_call.1} parent=93 // pred_check
          %p1091 = pneg %p238
        $region108: #{tpu_custom_call.1} parent=93 // pred_check_branch
          %1093 = sbr.rel (%p1091) target = $region110
        $region109: #{tpu_custom_call.1} parent=93 // pred_region
          %p1094 = scmp.lt.s32.totalorder %s31, 1
          %s1095 = scalar_select %p1094, %s31, 1
          %p1096 = scmp.lt.s32.totalorder %s32, 1
          %s1097 = scalar_select %p1096, %s32, 1
          %s1098 = smul.addr %s1097, 16
          %s1099 = smul.addr %s1095, 32
          %s1100 = sadd.s32 %s1098, %s1099
          %s1101 = smul.addr %s1100, 8
          %s1102 = scalar_lea.vmem %s7, %s1101
        $region110: #{tpu_custom_call.1} parent=93 // pred_fallthru
          _
      $region94: #{tpu_custom_call.1} parent=5 // pred_fallthru
        _
    $region6: #{tpu_custom_call.1} parent=1 // loop_footer
      %s24 = sadd.s32 1, %s20
    $region7: #{tpu_custom_call.1} parent=1 // loop_footer_branch
      %19 = sbr.rel target = $region3
    $region8: #{tpu_custom_call.1} parent=1 // loop_exit
      _
    %1103 = vsyncpa [#allocation4], 1
    %s1104 = scalar_lea.sflag [#allocation4], 1
    %1105 = vsyncpa %s1104, 1
    %1106 = vsyncpa [#allocation6], 1
    %s1107 = scalar_lea.sflag [#allocation6], 1
    %1108 = vsyncpa %s1107, 1

</llo_original>
